<compile_context>
chip_gen: v5e
topology: v5e:2x2
jax: 0.10.0
libtpu: 0.0.40
codegen_flags: <defaults>
</compile_context>

<pallas_src>
import jax
import jax.numpy as jnp
from jax.experimental import pallas as pl
from jax.experimental.pallas import tpu as pltpu


# --------------------------------------------------------------------------- #
# Kernel
# --------------------------------------------------------------------------- #
def _mlp_head_kernel(x_ref,
                     w1_ref, b1_ref,
                     w2_ref, b2_ref,
                     w3_ref, b3_ref,
                     w4_ref, b4_ref,
                     o_ref):
    # x tile: (TM, d) bf16 (cast in the wrapper); MXU f32 accumulation.
    x = x_ref[...]

    # layer1 + ReLU  (Dropout p=0.1 is identity in eval/inference mode)
    h = jnp.dot(x, w1_ref[...], preferred_element_type=jnp.float32)
    h = jnp.maximum(h + b1_ref[...], 0.0)
    # TODO(synk): training-mode dropout (p=0.1) omitted; forward uses eval semantics.

    # layer2 + ReLU
    h = jnp.dot(h.astype(jnp.bfloat16), w2_ref[...],
                preferred_element_type=jnp.float32)
    h = jnp.maximum(h + b2_ref[...], 0.0)

    # layer3 + ReLU
    h = jnp.dot(h.astype(jnp.bfloat16), w3_ref[...],
                preferred_element_type=jnp.float32)
    h = jnp.maximum(h + b3_ref[...], 0.0)

    # layer4: [TM, d/8] x [d/8, 1].  N=1 would use 1/128..1/256 of the MXU, so
    # do it on the VPU (multiply) + XLU (lane reduction) instead.
    out = jnp.sum(h * w4_ref[...], axis=-1, keepdims=True) + b4_ref[...]  # (TM, 1) f32
    o_ref[...] = out.astype(o_ref.dtype)


# --------------------------------------------------------------------------- #
# Tiling / VMEM budgeting helpers
# --------------------------------------------------------------------------- #
def _round_up(x, n):
    return ((x + n - 1) // n) * n


def _total_vmem_bytes():
    """Physical VMEM per TensorCore; conservative 64 MiB fallback (v7x-sized)."""
    try:
        info = pltpu.get_tpu_info()
        vmem = getattr(info, "vmem_capacity_bytes", None)
        if vmem:
            return int(vmem)
    except Exception:
        pass
    return 64 << 20


def _pick_tm(m, d, usable_vmem, weight_bytes, tm_max):
    """Largest row tile that fits the VMEM budget; >=2 grid steps when possible."""
    # Per-row VMEM (bytes): bf16 x tile double-buffered (4*d) + out (8) +
    # f32 intermediates (3.5*d) + bf16 casts (1.5*d)  ~= 9*d.
    per_row = 9 * d + 16
    budget_rows = (usable_vmem - weight_bytes - (4 << 20)) // per_row
    tm = int(min(tm_max, max(budget_rows, 8)))
    tm = min(tm, _round_up(m, 8))
    if tm >= 128:
        tm = (tm // 128) * 128          # lane/sublane friendly for big tiles
    else:
        tm = _round_up(tm, 8)           # (8, 128) rule: sublane multiple of 8
    # v7x megacore: make sure the "parallel" grid axis has >= 2 steps so both
    # TensorCores get work (neutral on v5e/v6e).
    if pl.cdiv(_round_up(m, 8), tm) < 2 and tm >= 16:
        tm = _round_up(tm // 2, 8)
    return tm


def _resident_spec(arr):
    """Full-array block, constant index_map, single-buffered (grid-invariant)."""
    idx_map = lambda i: (0, 0)
    try:
        return pl.BlockSpec(arr.shape, idx_map, pipeline_mode=pl.Buffered(1))
    except Exception:
        # Fallback for JAX versions without pipeline_mode/Buffered.
        return pl.BlockSpec(arr.shape, idx_map)


# --------------------------------------------------------------------------- #
# Wrapper
# --------------------------------------------------------------------------- #
def regression_head_pallas(x, params):
    """x: [seq_len, batch, d_embedding] float32. params: kernel-layout weights."""
    seq_len, batch, d = x.shape
    m = seq_len * batch

    # Stream x as bf16 (MXU inputs were bf16 anyway) -> half the HBM bytes.
    x2d = x.reshape(m, d).astype(jnp.bfloat16)

    w1, b1 = params["w1"], params["b1"]   # [d,    d//2] bf16, [1, d//2] f32
    w2, b2 = params["w2"], params["b2"]   # [d//2, d//4] bf16, [1, d//4] f32
    w3, b3 = params["w3"], params["b3"]   # [d//4, d//8] bf16, [1, d//8] f32
    w4, b4 = params["w4"], params["b4"]   # [1,    d//8] f32,  [1, 1]    f32

    weight_bytes = sum(int(v.size) * v.dtype.itemsize for v in params.values())

    # Per-core VMEM budget (leave headroom; weights are replicated per TC on v7x).
    total_vmem = _total_vmem_bytes()
    usable_vmem = min(100 << 20, int(total_vmem * 0.875))
    tm_max = 1024 if total_vmem >= (96 << 20) else 512   # v5e/v6e vs v7x

    tm = _pick_tm(m, d, usable_vmem, weight_bytes, tm_max)
    num_tiles = pl.cdiv(m, tm)
    m_pad = num_tiles * tm
    if m_pad != m:
        # VMEM OOB reads are unchecked: pad the ragged tail instead.
        x2d = jnp.pad(x2d, ((0, m_pad - m), (0, 0)))

    d2, d4, d8 = d // 2, d // 4, d // 8

    # Explicit scoped-VMEM limit: x tile (x2 buffers) + single-buffered weights
    # + f32 intermediates / bf16 casts + output tile, with margin.
    est_vmem = (2 * tm * d * 2                       # bf16 x tile, double-buffered
                + weight_bytes                       # single-buffered weights/biases
                + tm * (d2 + d4 + d8) * 4            # f32 intermediates
                + tm * (d2 + d4) * 2                 # bf16 casts feeding the MXU
                + 2 * tm * 4)                        # f32 output tile, double-buffered
    vmem_limit = int(min(usable_vmem, max(32 << 20, est_vmem + (4 << 20))))

    flops = 2 * m_pad * (d * d2 + d2 * d4 + d4 * d8 + d8)
    bytes_accessed = (int(x2d.size) * x2d.dtype.itemsize   # bf16 x stream
                      + weight_bytes
                      + m_pad * 4)                          # f32 output
    cost = pl.CostEstimate(flops=int(flops), transcendentals=0,
                           bytes_accessed=int(bytes_accessed))

    out2d = pl.pallas_call(
        _mlp_head_kernel,
        out_shape=jax.ShapeDtypeStruct((m_pad, 1), jnp.float32),
        grid=(num_tiles,),
        in_specs=[
            pl.BlockSpec((tm, d), lambda i: (i, 0)),
            _resident_spec(w1), _resident_spec(b1),
            _resident_spec(w2), _resident_spec(b2),
            _resident_spec(w3), _resident_spec(b3),
            _resident_spec(w4), _resident_spec(b4),
        ],
        out_specs=pl.BlockSpec((tm, 1), lambda i: (i, 0)),
        compiler_params=pltpu.CompilerParams(
            # Rows are independent -> v7x can shard the grid across its 2 TCs.
            dimension_semantics=("parallel",),
            vmem_limit_bytes=vmem_limit),
        cost_estimate=cost,
    )(x2d, w1, b1, w2, b2, w3, b3, w4, b4)

    return out2d[:m].reshape(seq_len, batch, 1)


# --------------------------------------------------------------------------- #
# Params (PyTorch-like init) and reference
# --------------------------------------------------------------------------- #
def init_params(d_embedding, key):
    """Matches PyTorch nn.Linear default init; weights stored as [in, out] f32."""
    dims = [d_embedding, d_embedding // 2, d_embedding // 4, d_embedding // 8, 1]
    params = {}
    keys = jax.random.split(key, 8)
    for li in range(4):
        fan_in, fan_out = dims[li], dims[li + 1]
        bound = 1.0 / jnp.sqrt(fan_in)
        w = jax.random.uniform(keys[2 * li], (fan_in, fan_out),
                               minval=-bound, maxval=bound, dtype=jnp.float32)
        b = jax.random.uniform(keys[2 * li + 1], (1, fan_out),
                               minval=-bound, maxval=bound, dtype=jnp.float32)
        params[f"w{li + 1}"] = w
        params[f"b{li + 1}"] = b
    return params


def prepare_kernel_params(params):
    """Kernel layout: bf16 MXU weights for layers 1-3; layer-4 weight as f32 row."""
    return {
        "w1": params["w1"].astype(jnp.bfloat16), "b1": params["b1"],
        "w2": params["w2"].astype(jnp.bfloat16), "b2": params["b2"],
        "w3": params["w3"].astype(jnp.bfloat16), "b3": params["b3"],
        "w4": params["w4"].T,                     "b4": params["b4"],  # (1, d//8) f32
    }


def regression_head_ref(x, params):
    """Pure-JAX f32 reference (PyTorch eval-mode semantics)."""
    h = jnp.maximum(x @ params["w1"] + params["b1"][0], 0.0)
    h = jnp.maximum(h @ params["w2"] + params["b2"][0], 0.0)
    h = jnp.maximum(h @ params["w3"] + params["b3"][0], 0.0)
    return h @ params["w4"] + params["b4"][0]


if __name__ == "__main__":
    seq_len, batch, d_embedding = 8, 2, 32
    key = jax.random.PRNGKey(0)
    k_x, k_p = jax.random.split(key)
    x = jax.random.normal(k_x, (seq_len, batch, d_embedding), dtype=jnp.float32)
    params = init_params(d_embedding, k_p)
    kparams = prepare_kernel_params(params)

    out = regression_head_pallas(x, kparams)
    out = jax.block_until_ready(out)

    ref = regression_head_ref(x, params)
    assert out.shape == (seq_len, batch, 1), out.shape
    # bf16 inputs/weights (f32 accumulation) vs f32 reference -> relaxed tolerance.
    assert jnp.allclose(out, ref, atol=5e-2, rtol=5e-2), "mismatch vs reference"
    print("KERNEL_OK")
</pallas_src>

<mosaic_0001>
module attributes {stable_mosaic.version = 11 : i64} {
  func.func @_mlp_head_kernel(%arg0: i32, %arg1: memref<8x32xbf16, #tpu.memory_space<vmem>>, %arg2: memref<32x16xbf16, #tpu.memory_space<vmem>>, %arg3: memref<1x16xf32, #tpu.memory_space<vmem>>, %arg4: memref<16x8xbf16, #tpu.memory_space<vmem>>, %arg5: memref<1x8xf32, #tpu.memory_space<vmem>>, %arg6: memref<8x4xbf16, #tpu.memory_space<vmem>>, %arg7: memref<1x4xf32, #tpu.memory_space<vmem>>, %arg8: memref<1x4xf32, #tpu.memory_space<vmem>>, %arg9: memref<1x1xf32, #tpu.memory_space<vmem>>, %arg10: memref<8x1xf32, #tpu.memory_space<vmem>>) attributes {dimension_semantics = [#tpu.dimension_semantics<parallel>], iteration_bounds = array<i64: 2>, scalar_prefetch = 0 : i64, scratch_operands = 0 : i64, tpu.core_type = #tpu.core_type<tc>, window_params = [{transform_indices = @transform_0, window_bounds = array<i64: 8, 32>}, {pipeline_mode = #tpu.pipeline_mode<synchronous>, transform_indices = @transform_1, window_bounds = array<i64: 32, 16>}, {pipeline_mode = #tpu.pipeline_mode<synchronous>, transform_indices = @transform_2, window_bounds = array<i64: 1, 16>}, {pipeline_mode = #tpu.pipeline_mode<synchronous>, transform_indices = @transform_3, window_bounds = array<i64: 16, 8>}, {pipeline_mode = #tpu.pipeline_mode<synchronous>, transform_indices = @transform_4, window_bounds = array<i64: 1, 8>}, {pipeline_mode = #tpu.pipeline_mode<synchronous>, transform_indices = @transform_5, window_bounds = array<i64: 8, 4>}, {pipeline_mode = #tpu.pipeline_mode<synchronous>, transform_indices = @transform_6, window_bounds = array<i64: 1, 4>}, {pipeline_mode = #tpu.pipeline_mode<synchronous>, transform_indices = @transform_7, window_bounds = array<i64: 1, 4>}, {pipeline_mode = #tpu.pipeline_mode<synchronous>, transform_indices = @transform_8, window_bounds = array<i64: 1, 1>}, {transform_indices = @transform_9, window_bounds = array<i64: 8, 1>}]} {
    %c0 = arith.constant 0 : index
    %c0_0 = arith.constant 0 : index
    %0 = vector.load %arg1[%c0, %c0_0] : memref<8x32xbf16, #tpu.memory_space<vmem>>, vector<8x32xbf16>
    %c0_1 = arith.constant 0 : index
    %c0_2 = arith.constant 0 : index
    %1 = vector.load %arg2[%c0_1, %c0_2] : memref<32x16xbf16, #tpu.memory_space<vmem>>, vector<32x16xbf16>
    %cst = arith.constant dense<0.000000e+00> : vector<8x16xf32>
    %2 = tpu.matmul %0, %1, %cst {dimension_numbers = #tpu.dot_dimension_numbers<[1], [0], [0], [1], [0, 0, 1, 1], [], []>} : vector<8x32xbf16>, vector<32x16xbf16>, vector<8x16xf32> -> vector<8x16xf32>
    %c0_3 = arith.constant 0 : index
    %c0_4 = arith.constant 0 : index
    %3 = vector.load %arg3[%c0_3, %c0_4] : memref<1x16xf32, #tpu.memory_space<vmem>>, vector<1x16xf32>
    %4 = vector.broadcast %3 : vector<1x16xf32> to vector<8x16xf32>
    %5 = arith.addf %2, %4 : vector<8x16xf32>
    %cst_5 = arith.constant 0.000000e+00 : f32
    %6 = vector.broadcast %cst_5 : f32 to vector<8x16xf32>
    %7 = arith.maximumf %5, %6 : vector<8x16xf32>
    %8 = arith.truncf %7 : vector<8x16xf32> to vector<8x16xbf16>
    %c0_6 = arith.constant 0 : index
    %c0_7 = arith.constant 0 : index
    %9 = vector.load %arg4[%c0_6, %c0_7] : memref<16x8xbf16, #tpu.memory_space<vmem>>, vector<16x8xbf16>
    %cst_8 = arith.constant dense<0.000000e+00> : vector<8x8xf32>
    %10 = tpu.matmul %8, %9, %cst_8 {dimension_numbers = #tpu.dot_dimension_numbers<[1], [0], [0], [1], [0, 0, 1, 1], [], []>} : vector<8x16xbf16>, vector<16x8xbf16>, vector<8x8xf32> -> vector<8x8xf32>
    %c0_9 = arith.constant 0 : index
    %c0_10 = arith.constant 0 : index
    %11 = vector.load %arg5[%c0_9, %c0_10] : memref<1x8xf32, #tpu.memory_space<vmem>>, vector<1x8xf32>
    %12 = vector.broadcast %11 : vector<1x8xf32> to vector<8x8xf32>
    %13 = arith.addf %10, %12 : vector<8x8xf32>
    %cst_11 = arith.constant 0.000000e+00 : f32
    %14 = vector.broadcast %cst_11 : f32 to vector<8x8xf32>
    %15 = arith.maximumf %13, %14 : vector<8x8xf32>
    %16 = arith.truncf %15 : vector<8x8xf32> to vector<8x8xbf16>
    %c0_12 = arith.constant 0 : index
    %c0_13 = arith.constant 0 : index
    %17 = vector.load %arg6[%c0_12, %c0_13] : memref<8x4xbf16, #tpu.memory_space<vmem>>, vector<8x4xbf16>
    %cst_14 = arith.constant dense<0.000000e+00> : vector<8x4xf32>
    %18 = tpu.matmul %16, %17, %cst_14 {dimension_numbers = #tpu.dot_dimension_numbers<[1], [0], [0], [1], [0, 0, 1, 1], [], []>} : vector<8x8xbf16>, vector<8x4xbf16>, vector<8x4xf32> -> vector<8x4xf32>
    %c0_15 = arith.constant 0 : index
    %c0_16 = arith.constant 0 : index
    %19 = vector.load %arg7[%c0_15, %c0_16] : memref<1x4xf32, #tpu.memory_space<vmem>>, vector<1x4xf32>
    %20 = vector.broadcast %19 : vector<1x4xf32> to vector<8x4xf32>
    %21 = arith.addf %18, %20 : vector<8x4xf32>
    %cst_17 = arith.constant 0.000000e+00 : f32
    %22 = vector.broadcast %cst_17 : f32 to vector<8x4xf32>
    %23 = arith.maximumf %21, %22 : vector<8x4xf32>
    %c0_18 = arith.constant 0 : index
    %c0_19 = arith.constant 0 : index
    %24 = vector.load %arg8[%c0_18, %c0_19] : memref<1x4xf32, #tpu.memory_space<vmem>>, vector<1x4xf32>
    %25 = vector.broadcast %24 : vector<1x4xf32> to vector<8x4xf32>
    %26 = arith.mulf %23, %25 : vector<8x4xf32>
    %cst_20 = arith.constant dense<0.000000e+00> : vector<8xf32>
    %27 = vector.multi_reduction <add>, %26, %cst_20 [1] : vector<8x4xf32> to vector<8xf32>
    %28 = vector.shape_cast %27 : vector<8xf32> to vector<8x1xf32>
    %c0_21 = arith.constant 0 : index
    %c0_22 = arith.constant 0 : index
    %29 = vector.load %arg9[%c0_21, %c0_22] : memref<1x1xf32, #tpu.memory_space<vmem>>, vector<1x1xf32>
    %30 = vector.broadcast %29 : vector<1x1xf32> to vector<8x1xf32>
    %31 = arith.addf %28, %30 : vector<8x1xf32>
    %c0_23 = arith.constant 0 : index
    %c0_24 = arith.constant 0 : index
    %32 = vector.load %arg10[%c0_23, %c0_24] : memref<8x1xf32, #tpu.memory_space<vmem>>, vector<8x1xf32>
    tpu.vector_store %arg10[%c0_23, %c0_24], %31 {strides = array<i32>} : memref<8x1xf32, #tpu.memory_space<vmem>>, vector<8x1xf32>,
    return
  }
  func.func @transform_0(%arg0: i32) -> (i32, i32) {
    %c0_i32 = arith.constant 0 : i32
    %c0_i32_0 = arith.constant 0 : i32
    return %arg0, %c0_i32 : i32, i32
  }
  func.func @transform_1(%arg0: i32) -> (i32, i32) {
    %c0_i32 = arith.constant 0 : i32
    %c0_i32_0 = arith.constant 0 : i32
    %c0_i32_1 = arith.constant 0 : i32
    return %c0_i32, %c0_i32_0 : i32, i32
  }
  func.func @transform_2(%arg0: i32) -> (i32, i32) {
    %c0_i32 = arith.constant 0 : i32
    %c0_i32_0 = arith.constant 0 : i32
    %c0_i32_1 = arith.constant 0 : i32
    return %c0_i32, %c0_i32_0 : i32, i32
  }
  func.func @transform_3(%arg0: i32) -> (i32, i32) {
    %c0_i32 = arith.constant 0 : i32
    %c0_i32_0 = arith.constant 0 : i32
    %c0_i32_1 = arith.constant 0 : i32
    return %c0_i32, %c0_i32_0 : i32, i32
  }
  func.func @transform_4(%arg0: i32) -> (i32, i32) {
    %c0_i32 = arith.constant 0 : i32
    %c0_i32_0 = arith.constant 0 : i32
    %c0_i32_1 = arith.constant 0 : i32
    return %c0_i32, %c0_i32_0 : i32, i32
  }
  func.func @transform_5(%arg0: i32) -> (i32, i32) {
    %c0_i32 = arith.constant 0 : i32
    %c0_i32_0 = arith.constant 0 : i32
    %c0_i32_1 = arith.constant 0 : i32
    return %c0_i32, %c0_i32_0 : i32, i32
  }
  func.func @transform_6(%arg0: i32) -> (i32, i32) {
    %c0_i32 = arith.constant 0 : i32
    %c0_i32_0 = arith.constant 0 : i32
    %c0_i32_1 = arith.constant 0 : i32
    return %c0_i32, %c0_i32_0 : i32, i32
  }
  func.func @transform_7(%arg0: i32) -> (i32, i32) {
    %c0_i32 = arith.constant 0 : i32
    %c0_i32_0 = arith.constant 0 : i32
    %c0_i32_1 = arith.constant 0 : i32
    return %c0_i32, %c0_i32_0 : i32, i32
  }
  func.func @transform_8(%arg0: i32) -> (i32, i32) {
    %c0_i32 = arith.constant 0 : i32
    %c0_i32_0 = arith.constant 0 : i32
    %c0_i32_1 = arith.constant 0 : i32
    return %c0_i32, %c0_i32_0 : i32, i32
  }
  func.func @transform_9(%arg0: i32) -> (i32, i32) {
    %c0_i32 = arith.constant 0 : i32
    %c0_i32_0 = arith.constant 0 : i32
    return %arg0, %c0_i32 : i32, i32
  }
}

</mosaic_0001>

<llo_original>
// kernel: tpu_custom_call.1
$region0: #{tpu_custom_call.1}
  #allocation0 [shape = 'u32[]', space=smem, size = 0x4, offset = 0x4, fixed_abs, tag = 'smem constant byte address 0x4 - core index']
  #allocation1 [shape = 'u32[72,128]{1,0:T(1,128)}', space=vmem, size = 0x9000, scoped, tag = 'internal scratch']
  #allocation2 [shape = 'f32[1,1]{1,0:T(1,128)S(1)}', space=vmem, size = 0x200, scoped, tag = 'scoped memory for tpu_custom_call.1']
  %s0 = inlined_call_operand.vmem [shape: bf16[16,32], index: 0, kind: input, shape index: {}]
  %s1 = inlined_call_operand.vmem [shape: bf16[32,16], index: 1, kind: input, shape index: {}]
  %s2 = inlined_call_operand.vmem [shape: f32[1,16], index: 2, kind: input, shape index: {}]
  %s3 = inlined_call_operand.vmem [shape: bf16[16,8], index: 3, kind: input, shape index: {}]
  %s4 = inlined_call_operand.vmem [shape: f32[1,8], index: 4, kind: input, shape index: {}]
  %s5 = inlined_call_operand.vmem [shape: bf16[8,4], index: 5, kind: input, shape index: {}]
  %s6 = inlined_call_operand.vmem [shape: f32[1,4], index: 6, kind: input, shape index: {}]
  %s7 = inlined_call_operand.vmem [shape: f32[1,4], index: 7, kind: input, shape index: {}]
  %s8 = inlined_call_operand.<no memory space> [shape: f32[1,1], index: 8, kind: input, shape index: {}]
  %s9 = inlined_call_operand.vmem [shape: f32[16,1], index: 9, kind: output, shape index: {}]
  %s10 = sld [smem:[#allocation0]]
  $region69: #{tpu_custom_call.1} parent=0
    _
  %s12 = ssub.s32 1, %s10
  %s13 = scalar_select 0, %s12, %s10
  %v14 = vstv %s8
  %15 = vst [vmem:[#allocation2] sm:$0x1] %v14
  loop: start=0, step=1, limit=4
  $region2: #{tpu_custom_call.1} parent=0 // loop_pre_header
    _
  $region3: #{tpu_custom_call.1} parent=0 // loop_header
    %s17 = sphi 0, %s21
    %p18 = scmp.ge.s32.totalorder %s17, 4
    %s27 = sphi 0, %s29
    %s30 = sphi 0, %s27
    %s31 = sphi 0, %s30
    %s47 = sphi 0, %s31
    %s51 = sphi 0, %s51
    %s53 = sphi 0, %s51
    %s54 = sphi 0, %s53
    %s68 = sphi 0, %s54
    %s72 = sphi 0, %s72
    %s74 = sphi 0, %s72
    %s75 = sphi 0, %s74
    %s89 = sphi 0, %s75
    %s93 = sphi 0, %s93
    %s95 = sphi 0, %s93
    %s96 = sphi 0, %s95
    %s110 = sphi 0, %s96
    %s114 = sphi 0, %s114
    %s116 = sphi 0, %s114
    %s117 = sphi 0, %s116
    %s131 = sphi 0, %s117
    %s135 = sphi 0, %s135
    %s137 = sphi 0, %s135
    %s138 = sphi 0, %s137
    %s152 = sphi 0, %s138
    %s156 = sphi 0, %s156
    %s158 = sphi 0, %s156
    %s159 = sphi 0, %s158
    %s173 = sphi 0, %s159
    %s177 = sphi 0, %s177
    %s179 = sphi 0, %s177
    %s180 = sphi 0, %s179
    %s194 = sphi 0, %s180
    %s198 = sphi 0, %s198
    %s200 = sphi 0, %s198
    %s201 = sphi 0, %s200
    %s215 = sphi 0, %s201
    %s221 = sphi 0, %s223
    %s224 = sphi 0, %s221
    %s225 = sphi 0, %s224
    %s241 = sphi 0, %s225
  $region4: #{tpu_custom_call.1} parent=0 // loop_header_branch
    %20 = sbr.rel (%p18) target = $region8
  $region5: #{tpu_custom_call.1} parent=0 // loop_body
    %s22 = ssub.s32 %s17, 1
    %s23 = ssub.s32 %s17, 2
    %s24 = sadd.s32 %s17, 1
    %s25 = ssub.s32 %s17, %s24
    %p26 = scmp.eq.s32.totalorder %s25, 0
    %s28 = sadd.s32 %s27, 1
    %s29 = scalar_select %p26, %s27, %s28
    %p32 = pneg %p26
    %p33 = scmp.eq.s32.totalorder %s17, 1
    %p34 = por %p32, %p33
    %p35 = scmp.ne.s32.totalorder %s27, %s30
    %p36 = scmp.eq.s32.totalorder %s17, 0
    %p37 = por %p35, %p36
    %p38 = scmp.ne.s32.totalorder %s27, %s30
    %p39 = scmp.eq.s32.totalorder %s22, 1
    %p40 = por %p38, %p39
    %p41 = scmp.ne.s32.totalorder %s30, %s31
    %p42 = scmp.eq.s32.totalorder %s22, 0
    %p43 = por %p41, %p42
    %p44 = scmp.ne.s32.totalorder %s30, %s31
    %p45 = scmp.eq.s32.totalorder %s23, 1
    %p46 = por %p44, %p45
    %p48 = scmp.ne.s32.totalorder %s31, %s47
    %p49 = scmp.eq.s32.totalorder %s23, 0
    %p50 = por %p48, %p49
    %s52 = sadd.s32 %s51, 1
    %p55 = scmp.eq.s32.totalorder %s17, 1
    %p56 = scmp.ne.s32.totalorder %s51, %s53
    %p57 = scmp.eq.s32.totalorder %s17, 0
    %p58 = por %p56, %p57
    %p59 = scmp.ne.s32.totalorder %s51, %s53
    %p60 = scmp.eq.s32.totalorder %s22, 1
    %p61 = por %p59, %p60
    %p62 = scmp.ne.s32.totalorder %s53, %s54
    %p63 = scmp.eq.s32.totalorder %s22, 0
    %p64 = por %p62, %p63
    %p65 = scmp.ne.s32.totalorder %s53, %s54
    %p66 = scmp.eq.s32.totalorder %s23, 1
    %p67 = por %p65, %p66
    %p69 = scmp.ne.s32.totalorder %s54, %s68
    %p70 = scmp.eq.s32.totalorder %s23, 0
    %p71 = por %p69, %p70
    %s73 = sadd.s32 %s72, 1
    %p76 = scmp.eq.s32.totalorder %s17, 1
    %p77 = scmp.ne.s32.totalorder %s72, %s74
    %p78 = scmp.eq.s32.totalorder %s17, 0
    %p79 = por %p77, %p78
    %p80 = scmp.ne.s32.totalorder %s72, %s74
    %p81 = scmp.eq.s32.totalorder %s22, 1
    %p82 = por %p80, %p81
    %p83 = scmp.ne.s32.totalorder %s74, %s75
    %p84 = scmp.eq.s32.totalorder %s22, 0
    %p85 = por %p83, %p84
    %p86 = scmp.ne.s32.totalorder %s74, %s75
    %p87 = scmp.eq.s32.totalorder %s23, 1
    %p88 = por %p86, %p87
    %p90 = scmp.ne.s32.totalorder %s75, %s89
    %p91 = scmp.eq.s32.totalorder %s23, 0
    %p92 = por %p90, %p91
    %s94 = sadd.s32 %s93, 1
    %p97 = scmp.eq.s32.totalorder %s17, 1
    %p98 = scmp.ne.s32.totalorder %s93, %s95
    %p99 = scmp.eq.s32.totalorder %s17, 0
    %p100 = por %p98, %p99
    %p101 = scmp.ne.s32.totalorder %s93, %s95
    %p102 = scmp.eq.s32.totalorder %s22, 1
    %p103 = por %p101, %p102
    %p104 = scmp.ne.s32.totalorder %s95, %s96
    %p105 = scmp.eq.s32.totalorder %s22, 0
    %p106 = por %p104, %p105
    %p107 = scmp.ne.s32.totalorder %s95, %s96
    %p108 = scmp.eq.s32.totalorder %s23, 1
    %p109 = por %p107, %p108
    %p111 = scmp.ne.s32.totalorder %s96, %s110
    %p112 = scmp.eq.s32.totalorder %s23, 0
    %p113 = por %p111, %p112
    %s115 = sadd.s32 %s114, 1
    %p118 = scmp.eq.s32.totalorder %s17, 1
    %p119 = scmp.ne.s32.totalorder %s114, %s116
    %p120 = scmp.eq.s32.totalorder %s17, 0
    %p121 = por %p119, %p120
    %p122 = scmp.ne.s32.totalorder %s114, %s116
    %p123 = scmp.eq.s32.totalorder %s22, 1
    %p124 = por %p122, %p123
    %p125 = scmp.ne.s32.totalorder %s116, %s117
    %p126 = scmp.eq.s32.totalorder %s22, 0
    %p127 = por %p125, %p126
    %p128 = scmp.ne.s32.totalorder %s116, %s117
    %p129 = scmp.eq.s32.totalorder %s23, 1
    %p130 = por %p128, %p129
    %p132 = scmp.ne.s32.totalorder %s117, %s131
    %p133 = scmp.eq.s32.totalorder %s23, 0
    %p134 = por %p132, %p133
    %s136 = sadd.s32 %s135, 1
    %p139 = scmp.eq.s32.totalorder %s17, 1
    %p140 = scmp.ne.s32.totalorder %s135, %s137
    %p141 = scmp.eq.s32.totalorder %s17, 0
    %p142 = por %p140, %p141
    %p143 = scmp.ne.s32.totalorder %s135, %s137
    %p144 = scmp.eq.s32.totalorder %s22, 1
    %p145 = por %p143, %p144
    %p146 = scmp.ne.s32.totalorder %s137, %s138
    %p147 = scmp.eq.s32.totalorder %s22, 0
    %p148 = por %p146, %p147
    %p149 = scmp.ne.s32.totalorder %s137, %s138
    %p150 = scmp.eq.s32.totalorder %s23, 1
    %p151 = por %p149, %p150
    %p153 = scmp.ne.s32.totalorder %s138, %s152
    %p154 = scmp.eq.s32.totalorder %s23, 0
    %p155 = por %p153, %p154
    %s157 = sadd.s32 %s156, 1
    %p160 = scmp.eq.s32.totalorder %s17, 1
    %p161 = scmp.ne.s32.totalorder %s156, %s158
    %p162 = scmp.eq.s32.totalorder %s17, 0
    %p163 = por %p161, %p162
    %p164 = scmp.ne.s32.totalorder %s156, %s158
    %p165 = scmp.eq.s32.totalorder %s22, 1
    %p166 = por %p164, %p165
    %p167 = scmp.ne.s32.totalorder %s158, %s159
    %p168 = scmp.eq.s32.totalorder %s22, 0
    %p169 = por %p167, %p168
    %p170 = scmp.ne.s32.totalorder %s158, %s159
    %p171 = scmp.eq.s32.totalorder %s23, 1
    %p172 = por %p170, %p171
    %p174 = scmp.ne.s32.totalorder %s159, %s173
    %p175 = scmp.eq.s32.totalorder %s23, 0
    %p176 = por %p174, %p175
    %s178 = sadd.s32 %s177, 1
    %p181 = scmp.eq.s32.totalorder %s17, 1
    %p182 = scmp.ne.s32.totalorder %s177, %s179
    %p183 = scmp.eq.s32.totalorder %s17, 0
    %p184 = por %p182, %p183
    %p185 = scmp.ne.s32.totalorder %s177, %s179
    %p186 = scmp.eq.s32.totalorder %s22, 1
    %p187 = por %p185, %p186
    %p188 = scmp.ne.s32.totalorder %s179, %s180
    %p189 = scmp.eq.s32.totalorder %s22, 0
    %p190 = por %p188, %p189
    %p191 = scmp.ne.s32.totalorder %s179, %s180
    %p192 = scmp.eq.s32.totalorder %s23, 1
    %p193 = por %p191, %p192
    %p195 = scmp.ne.s32.totalorder %s180, %s194
    %p196 = scmp.eq.s32.totalorder %s23, 0
    %p197 = por %p195, %p196
    %s199 = sadd.s32 %s198, 1
    %p202 = scmp.eq.s32.totalorder %s17, 1
    %p203 = scmp.ne.s32.totalorder %s198, %s200
    %p204 = scmp.eq.s32.totalorder %s17, 0
    %p205 = por %p203, %p204
    %p206 = scmp.ne.s32.totalorder %s198, %s200
    %p207 = scmp.eq.s32.totalorder %s22, 1
    %p208 = por %p206, %p207
    %p209 = scmp.ne.s32.totalorder %s200, %s201
    %p210 = scmp.eq.s32.totalorder %s22, 0
    %p211 = por %p209, %p210
    %p212 = scmp.ne.s32.totalorder %s200, %s201
    %p213 = scmp.eq.s32.totalorder %s23, 1
    %p214 = por %p212, %p213
    %p216 = scmp.ne.s32.totalorder %s201, %s215
    %p217 = scmp.eq.s32.totalorder %s23, 0
    %p218 = por %p216, %p217
    %s219 = ssub.s32 %s17, %s24
    %p220 = scmp.eq.s32.totalorder %s219, 0
    %s222 = sadd.s32 %s221, 1
    %s223 = scalar_select %p220, %s221, %s222
    %p226 = pneg %p220
    %p227 = scmp.eq.s32.totalorder %s17, 1
    %p228 = por %p226, %p227
    %p229 = scmp.ne.s32.totalorder %s221, %s224
    %p230 = scmp.eq.s32.totalorder %s17, 0
    %p231 = por %p229, %p230
    %p232 = scmp.ne.s32.totalorder %s221, %s224
    %p233 = scmp.eq.s32.totalorder %s22, 1
    %p234 = por %p232, %p233
    %p235 = scmp.ne.s32.totalorder %s224, %s225
    %p236 = scmp.eq.s32.totalorder %s22, 0
    %p237 = por %p235, %p236
    %p238 = scmp.ne.s32.totalorder %s224, %s225
    %p239 = scmp.eq.s32.totalorder %s23, 1
    %p240 = por %p238, %p239
    %p242 = scmp.ne.s32.totalorder %s225, %s241
    %p243 = scmp.eq.s32.totalorder %s23, 0
    %p244 = por %p242, %p243
    %p245 = scmp.le.s32.totalorder 1, %s17
    %p246 = scmp.lt.s32.totalorder %s17, 3
    %p247 = pnand %p245, %p246
    %p248 = pneg %p247
    // Predicated region
    $region9: #{tpu_custom_call.1} parent=5 // pred_check
      _
    $region10: #{tpu_custom_call.1} parent=5 // pred_check_branch
      %250 = sbr.rel (%p247) target = $region12
    $region11: #{tpu_custom_call.1} parent=5 // pred_region
      %s251 = ssub.s32 %s17, 1
      // Predicated region
      $region13: #{tpu_custom_call.1} parent=11 // pred_check
        %p252 = pneg %p64
      $region14: #{tpu_custom_call.1} parent=11 // pred_check_branch
        %254 = sbr.rel (%p252) target = $region16
      $region15: #{tpu_custom_call.1} parent=11 // pred_region
        _
      $region16: #{tpu_custom_call.1} parent=11 // pred_fallthru
        _
      // Predicated region
      $region17: #{tpu_custom_call.1} parent=11 // pred_check
        %p255 = pneg %p85
      $region18: #{tpu_custom_call.1} parent=11 // pred_check_branch
        %257 = sbr.rel (%p255) target = $region20
      $region19: #{tpu_custom_call.1} parent=11 // pred_region
        _
      $region20: #{tpu_custom_call.1} parent=11 // pred_fallthru
        _
      // Predicated region
      $region21: #{tpu_custom_call.1} parent=11 // pred_check
        %p258 = pneg %p106
      $region22: #{tpu_custom_call.1} parent=11 // pred_check_branch
        %260 = sbr.rel (%p258) target = $region24
      $region23: #{tpu_custom_call.1} parent=11 // pred_region
        _
      $region24: #{tpu_custom_call.1} parent=11 // pred_fallthru
        _
      // Predicated region
      $region25: #{tpu_custom_call.1} parent=11 // pred_check
        %p261 = pneg %p127
      $region26: #{tpu_custom_call.1} parent=11 // pred_check_branch
        %263 = sbr.rel (%p261) target = $region28
      $region27: #{tpu_custom_call.1} parent=11 // pred_region
        _
      $region28: #{tpu_custom_call.1} parent=11 // pred_fallthru
        _
      // Predicated region
      $region29: #{tpu_custom_call.1} parent=11 // pred_check
        %p264 = pneg %p148
      $region30: #{tpu_custom_call.1} parent=11 // pred_check_branch
        %266 = sbr.rel (%p264) target = $region32
      $region31: #{tpu_custom_call.1} parent=11 // pred_region
        _
      $region32: #{tpu_custom_call.1} parent=11 // pred_fallthru
        _
      // Predicated region
      $region33: #{tpu_custom_call.1} parent=11 // pred_check
        %p267 = pneg %p169
      $region34: #{tpu_custom_call.1} parent=11 // pred_check_branch
        %269 = sbr.rel (%p267) target = $region36
      $region35: #{tpu_custom_call.1} parent=11 // pred_region
        _
      $region36: #{tpu_custom_call.1} parent=11 // pred_fallthru
        _
      // Predicated region
      $region37: #{tpu_custom_call.1} parent=11 // pred_check
        %p270 = pneg %p190
      $region38: #{tpu_custom_call.1} parent=11 // pred_check_branch
        %272 = sbr.rel (%p270) target = $region40
      $region39: #{tpu_custom_call.1} parent=11 // pred_region
        _
      $region40: #{tpu_custom_call.1} parent=11 // pred_fallthru
        _
      // Predicated region
      $region41: #{tpu_custom_call.1} parent=11 // pred_check
        %p273 = pneg %p211
      $region42: #{tpu_custom_call.1} parent=11 // pred_check_branch
        %275 = sbr.rel (%p273) target = $region44
      $region43: #{tpu_custom_call.1} parent=11 // pred_region
        _
      $region44: #{tpu_custom_call.1} parent=11 // pred_fallthru
        _
    $region12: #{tpu_custom_call.1} parent=5 // pred_fallthru
      _
    %p276 = scmp.lt.s32.totalorder %s17, 2
    // Predicated region
    $region45: #{tpu_custom_call.1} parent=5 // pred_check
      %p277 = pneg %p276
    $region46: #{tpu_custom_call.1} parent=5 // pred_check_branch
      %279 = sbr.rel (%p277) target = $region48
    $region47: #{tpu_custom_call.1} parent=5 // pred_region
      // Predicated region
      $region49: #{tpu_custom_call.1} parent=47 // pred_check
        %p280 = pneg %p37
      $region50: #{tpu_custom_call.1} parent=47 // pred_check_branch
        %282 = sbr.rel (%p280) target = $region52
      $region51: #{tpu_custom_call.1} parent=47 // pred_region
        %p283 = scmp.lt.s32.totalorder %s17, 1
        %s284 = scalar_select %p283, %s17, 1
        %s285 = smul.addr %s284, 4
        %s286 = scalar_lea.vmem %s0, %s285
      $region52: #{tpu_custom_call.1} parent=47 // pred_fallthru
        _
    $region48: #{tpu_custom_call.1} parent=5 // pred_fallthru
      _
    %p287 = scmp.le.s32.totalorder 1, %s17
    %p288 = scmp.lt.s32.totalorder %s17, 3
    %p289 = pnand %p287, %p288
    %p290 = pneg %p289
    // Predicated region
    $region53: #{tpu_custom_call.1} parent=5 // pred_check
      _
    $region54: #{tpu_custom_call.1} parent=5 // pred_check_branch
      %292 = sbr.rel (%p289) target = $region56
    $region55: #{tpu_custom_call.1} parent=5 // pred_region
      %s293 = ssub.s32 %s17, 1
      %p294 = scmp.lt.s32.totalorder %s22, 1
      %s295 = scalar_select %p294, %s22, 1
      %s296 = smul.addr %s295, 4
      %s297 = scalar_lea.vmem %s0, %s296
      %p298 = pneg %p43
      %p299 = pneg %p40
      %p300 = pneg %p64
      %p301 = pneg %p61
      %p302 = pneg %p85
      %p303 = pneg %p82
      %p304 = pneg %p106
      %p305 = pneg %p103
      %p306 = pneg %p127
      %p307 = pneg %p124
      %p308 = pneg %p148
      %p309 = pneg %p145
      %p310 = pneg %p169
      %p311 = pneg %p166
      %p312 = pneg %p190
      %p313 = pneg %p187
      %p314 = pneg %p211
      %p315 = pneg %p208
      %p316 = pneg %p237
      %p317 = pneg %p234
      %p318 = scmp.lt.s32.totalorder %s22, 1
      %s319 = scalar_select %p318, %s22, 1
      %s320 = smul.addr %s319, 8
      %s321 = scalar_lea.vmem %s9, %s320
      %p322 = scmp.lt.s32.totalorder %s22, 1
      %s323 = scalar_select %p322, %s22, 1
      %s324 = smul.addr %s323, 4
      %s325 = scalar_lea.vmem %s0, %s324
      %p326 = scmp.lt.s32.totalorder %s22, 1
      %s327 = scalar_select %p326, %s22, 1
      %s328 = smul.addr %s327, 8
      %s329 = scalar_lea.vmem %s9, %s328
      %v331 = vld [vmem:[%s325] sm:$0xf]
      %v332 = vld [vmem:[%s1] sm:$0xf]
      %v333 = vld [vmem:[%s1 + $0x4] sm:$0xf]
      %v334 = vld [vmem:[%s1 + $0x8] sm:$0xf]
      %v335 = vld [vmem:[%s1 + $0xc] sm:$0xf]
      %v336 = vld [vmem:[%s2] sm:$0x1]
      %v338 = vperm.slane %v336, 0
      %v344 = vunpack.c.l.b16 %v332
      %v345 = vunpack.c.l.b16 %v333
      %v346 = vunpack.c.l.b16 %v334
      %v347 = vunpack.c.l.b16 %v335
      %v348 = vpack.c.b16 %v345, %v344
      %v349 = vpack.c.b16 %v347, %v346
      %vm352 = vcmask 261120
      %v354 = vsel %vm352, %v331, 0
      %356 = vmatpush.bf16.msra.mxu0 0
      %357 = vmatpush.bf16.msra.mxu0 0
      %358 = vmatpush.bf16.msra.mxu0 0
      %359 = vmatpush.bf16.msra.mxu0 0
      %360 = vmatpush.bf16.msra.mxu0 0
      %361 = vmatpush.bf16.msra.mxu0 0
      %362 = vmatpush.bf16.msra.mxu0 %v349
      %363 = vmatpush.bf16.msra.mxu0 %v348
      %364 = vmatmul.bf16.gmra.mxu0 %v354
      %v365 = vpop.f32.mrf.mxu0
      %v366 = vadd.f32 %v338, %v365
      %v367 = vpop.f32.mrf.mxu0
      %368 = vdwg.mxu0
      %v369 = vmax.f32 %v366, 0.0
      %v370 = vpack.c.bf16 %v369, %v369
      %v371 = vld [vmem:[%s3] sm:$0xf]
      %v372 = vld [vmem:[%s3 + $0x4] sm:$0xf]
      %v373 = vld [vmem:[%s4] sm:$0x1]
      %v375 = vperm.slane %v373, 0
      %v379 = vunpack.c.l.b16 %v371
      %v380 = vunpack.c.l.b16 %v372
      %v381 = vpack.c.b16 %v380, %v379
      %vm383 = vcmask 130048
      %v385 = vsel %vm383, %v370, 0
      %387 = vmatpush.bf16.msra.mxu0 0
      %388 = vmatpush.bf16.msra.mxu0 0
      %389 = vmatpush.bf16.msra.mxu0 0
      %390 = vmatpush.bf16.msra.mxu0 0
      %391 = vmatpush.bf16.msra.mxu0 0
      %392 = vmatpush.bf16.msra.mxu0 0
      %393 = vmatpush.bf16.msra.mxu0 0
      %394 = vmatpush.bf16.msra.mxu0 %v381
      %395 = vmatmul.bf16.gmra.mxu0 %v385
      %v396 = vpop.f32.mrf.mxu0
      %v397 = vadd.f32 %v375, %v396
      %v398 = vpop.f32.mrf.mxu0
      %399 = vdwg.mxu0
      %v400 = vmax.f32 %v397, 0.0
      %v401 = vpack.c.bf16 %v400, %v400
      %v402 = vld [vmem:[%s5] sm:$0xf]
      %v403 = vld [vmem:[%s6] sm:$0x1]
      %v405 = vperm.slane %v403, 0
      %vm407 = vcmask 64512
      %v409 = vsel %vm407, %v401, 0
      %vm411 = vcmask 1043456
      %v413 = vsel %vm411, %v402, 0
      %415 = vmatpush.bf16.msra.mxu0 0
      %416 = vmatpush.bf16.msra.mxu0 0
      %417 = vmatpush.bf16.msra.mxu0 0
      %418 = vmatpush.bf16.msra.mxu0 0
      %419 = vmatpush.bf16.msra.mxu0 0
      %420 = vmatpush.bf16.msra.mxu0 0
      %421 = vmatpush.bf16.msra.mxu0 0
      %422 = vmatpush.bf16.msra.mxu0 %v413
      %423 = vmatmul.bf16.gmra.mxu0 %v409
      %v424 = vpop.f32.mrf.mxu0
      %v425 = vadd.f32 %v405, %v424
      %v426 = vpop.f32.mrf.mxu0
      %427 = vdwg.mxu0
      %v428 = vmax.f32 %v425, 0.0
      %v429 = vld [vmem:[%s7] sm:$0x1]
      %v431 = vperm.slane %v429, 0
      %v433 = vmul.f32 %v428, %v431
      %vm434 = vcmask 31744
      %v435 = vsel %vm434, %v433, 0.0
      %436 = vadd.xlane.f32.xlu0 %v435
      %v437 = vpop.xlane.xlu0 %436
      %v438 = vld [vmem:[#allocation2] sm:$0x1]
      %v440 = vperm.slane %v438, 0
      %v442 = vadd.f32 %v437, %v440
      %vm443 = vcmask 7168
      %444 = vst.msk [vmem:[%s329] sm:$0xff] %vm443, %v442
      %p445 = scmp.lt.s32.totalorder %s22, 1
      %s446 = scalar_select %p445, %s22, 1
      %s447 = smul.addr %s446, 8
      %s448 = scalar_lea.vmem %s9, %s447
      // Predicated region
      $region57: #{tpu_custom_call.1} parent=55 // pred_check
        %p449 = pneg %p234
      $region58: #{tpu_custom_call.1} parent=55 // pred_check_branch
        %451 = sbr.rel (%p449) target = $region60
      $region59: #{tpu_custom_call.1} parent=55 // pred_region
        _
      $region60: #{tpu_custom_call.1} parent=55 // pred_fallthru
        _
    $region56: #{tpu_custom_call.1} parent=5 // pred_fallthru
      _
    %p452 = scmp.le.s32.totalorder 2, %s17
    // Predicated region
    $region61: #{tpu_custom_call.1} parent=5 // pred_check
      %p453 = pneg %p452
    $region62: #{tpu_custom_call.1} parent=5 // pred_check_branch
      %455 = sbr.rel (%p453) target = $region64
    $region63: #{tpu_custom_call.1} parent=5 // pred_region
      %s456 = ssub.s32 %s17, 2
      // Predicated region
      $region65: #{tpu_custom_call.1} parent=63 // pred_check
        %p457 = pneg %p240
      $region66: #{tpu_custom_call.1} parent=63 // pred_check_branch
        %459 = sbr.rel (%p457) target = $region68
      $region67: #{tpu_custom_call.1} parent=63 // pred_region
        %p460 = scmp.lt.s32.totalorder %s23, 1
        %s461 = scalar_select %p460, %s23, 1
        %s462 = smul.addr %s461, 8
        %s463 = scalar_lea.vmem %s9, %s462
      $region68: #{tpu_custom_call.1} parent=63 // pred_fallthru
        _
    $region64: #{tpu_custom_call.1} parent=5 // pred_fallthru
      _
  $region6: #{tpu_custom_call.1} parent=0 // loop_footer
    %s21 = sadd.s32 1, %s17
  $region7: #{tpu_custom_call.1} parent=0 // loop_footer_branch
    %16 = sbr.rel target = $region3
  $region8: #{tpu_custom_call.1} parent=0 // loop_exit
    _

</llo_original>
